<compile_context>
chip_gen: v7x
topology: tpu7x:2x2x1
jax: 0.10.0
libtpu: 0.0.40
codegen_flags: <defaults>
</compile_context>

<pallas_src>
import functools

import numpy as np

import jax
import jax.numpy as jnp
from jax import lax
from jax.experimental import pallas as pl
from jax.experimental.pallas import tpu as pltpu

LANE = 128  # TPU lane width; all feature dims are zero-padded to a multiple.


def _round_up(x, m):
    return ((x + m - 1) // m) * m


# ---------------------------------------------------------------------------
# Kernel 1: sparse mean aggregation over in-neighbours.
#   grid = (N_pad // tm,) -> one (tm, F_pad) output block per grid step.
#   nbr_flat (N_pad*D_max,) i32 / deg (N_pad,) i32 live in SMEM (prefetch),
#   x is VMEM-resident as (N_pad, 1, F_pad) so one dynamic leading-axis index
#   gathers one neighbour row; per-row loop runs exactly deg[row] iterations.
# ---------------------------------------------------------------------------
def _mean_agg_kernel(nbr_ref, deg_ref, x_ref, out_ref, *, tm, d_max):
    i = pl.program_id(0)          # node-tile index (top-level only!)
    base = i * tm
    f_pad = x_ref.shape[-1]

    def row_body(r, carry):
        node = base + r
        d = deg_ref[node]                       # actual in-degree (SMEM)

        def nb_body(s, acc):
            src = nbr_ref[node * d_max + s]     # neighbour id (SMEM scalar)
            return acc + x_ref[src].astype(jnp.float32)   # (1, F_pad) gather

        acc = lax.fori_loop(0, d, nb_body,
                            jnp.zeros((1, f_pad), jnp.float32))
        # mean over neighbours; deg==0 -> acc==0 -> 0 (PyG scatter-mean).
        mean = acc / jnp.maximum(d.astype(jnp.float32), 1.0)
        out_ref[r] = mean.astype(out_ref.dtype)
        return carry

    lax.fori_loop(0, tm, row_body, 0)


def mean_aggregate(x, nbr_flat, deg, *, d_max, tm):
    """x: (N_pad, F_pad), nbr_flat: (N_pad*D_max,) i32, deg: (N_pad,) i32."""
    n_pad, f_pad = x.shape
    assert n_pad % tm == 0 and nbr_flat.shape[0] == n_pad * d_max
    x3 = x.reshape(n_pad, 1, f_pad)

    grid_spec = pltpu.PrefetchScalarGridSpec(
        num_scalar_prefetch=2,
        grid=(n_pad // tm,),
        in_specs=[
            # whole feature table resident in VMEM (constant block index ->
            # fetched once, reused across node tiles / both cores on v7x)
            pl.BlockSpec((n_pad, 1, f_pad), lambda i, nbr, deg: (0, 0, 0)),
        ],
        out_specs=pl.BlockSpec((tm, 1, f_pad), lambda i, nbr, deg: (i, 0, 0)),
    )
    out = pl.pallas_call(
        functools.partial(_mean_agg_kernel, tm=tm, d_max=d_max),
        grid_spec=grid_spec,
        out_shape=jax.ShapeDtypeStruct((n_pad, 1, f_pad), x.dtype),
        compiler_params=pltpu.CompilerParams(
            dimension_semantics=("parallel",)),
    )(nbr_flat, deg, x3)
    return out.reshape(n_pad, f_pad)


# ---------------------------------------------------------------------------
# Kernel 2: fused SAGEConv layer
#   out = x @ Wr^T + agg @ Wl^T + b   (+ ReLU, or + masked log_softmax)
# ---------------------------------------------------------------------------
def _finish(h, apply_relu, softmax_valid_cols):
    if apply_relu:
        h = jnp.maximum(h, 0.0)
    if softmax_valid_cols is not None:
        # fused log_softmax over the class (lane) dim; padded lanes masked.
        # tn == fout_pad here, so no program_id offset is needed.
        col = lax.broadcasted_iota(jnp.int32, h.shape, 1)
        h = jnp.where(col < softmax_valid_cols, h, -1e30)
        m = jnp.max(h, axis=1, keepdims=True)
        e = jnp.exp(h - m)
        s = jnp.sum(e, axis=1, keepdims=True)
        h = h - m - jnp.log(s)
    return h


def _sage_layer_kernel_single_k(x_ref, agg_ref, wr_ref, wl_ref, b_ref, o_ref,
                                *, apply_relu, softmax_valid_cols):
    # Whole contraction in one step: no scratch, no pl.when, no program_id.
    h = (jnp.dot(x_ref[...], wr_ref[...], preferred_element_type=jnp.float32)
         + jnp.dot(agg_ref[...], wl_ref[...], preferred_element_type=jnp.float32)
         + b_ref[...])
    h = _finish(h, apply_relu, softmax_valid_cols)
    o_ref[...] = h.astype(o_ref.dtype)


def _sage_layer_kernel_multi_k(x_ref, agg_ref, wr_ref, wl_ref, b_ref, o_ref,
                               acc_ref, *, apply_relu, softmax_valid_cols):
    # program_id/num_programs hoisted to the top level (never inside pl.when).
    k = pl.program_id(2)
    is_first = k == 0
    is_last = k == pl.num_programs(2) - 1

    @pl.when(is_first)
    def _init():
        acc_ref[...] = jnp.zeros_like(acc_ref)

    # both matmuls folded into one accumulator read-modify-write
    acc_ref[...] += (
        jnp.dot(x_ref[...], wr_ref[...], preferred_element_type=jnp.float32)
        + jnp.dot(agg_ref[...], wl_ref[...], preferred_element_type=jnp.float32))

    @pl.when(is_last)
    def _finalize():
        h = acc_ref[...] + b_ref[...]
        h = _finish(h, apply_relu, softmax_valid_cols)
        o_ref[...] = h.astype(o_ref.dtype)


def sage_layer(x, agg, wr_t, wl_t, b_row, *, apply_relu,
               softmax_valid_cols=None, out_dtype=None,
               tm=128, tn=LANE, tk=256):
    n_pad, fin_pad = x.shape
    fout_pad = wr_t.shape[1]
    assert agg.shape == x.shape and wr_t.shape == wl_t.shape
    assert wr_t.shape[0] == fin_pad and b_row.shape == (1, fout_pad)

    tm = min(tm, n_pad)
    tk = min(tk, fin_pad)
    tn = fout_pad if softmax_valid_cols is not None else min(tn, fout_pad)
    assert n_pad % tm == 0 and fin_pad % tk == 0 and fout_pad % tn == 0
    gk = fin_pad // tk
    out_dtype = out_dtype if out_dtype is not None else x.dtype

    in_specs = [
        pl.BlockSpec((tm, tk), lambda i, j, k: (i, k)),   # x tile
        pl.BlockSpec((tm, tk), lambda i, j, k: (i, k)),   # aggregated tile
        pl.BlockSpec((tk, tn), lambda i, j, k: (k, j)),   # W_r^T (no i dep)
        pl.BlockSpec((tk, tn), lambda i, j, k: (k, j)),   # W_l^T (no i dep)
        pl.BlockSpec((1, tn), lambda i, j, k: (0, j)),    # bias row (f32)
    ]
    out_specs = pl.BlockSpec((tm, tn), lambda i, j, k: (i, j))

    if gk == 1:
        kernel = functools.partial(_sage_layer_kernel_single_k,
                                   apply_relu=apply_relu,
                                   softmax_valid_cols=softmax_valid_cols)
        scratch = []
    else:
        kernel = functools.partial(_sage_layer_kernel_multi_k,
                                   apply_relu=apply_relu,
                                   softmax_valid_cols=softmax_valid_cols)
        scratch = [pltpu.VMEM((tm, tn), jnp.float32)]

    return pl.pallas_call(
        kernel,
        grid=(n_pad // tm, fout_pad // tn, gk),
        in_specs=in_specs,
        out_specs=out_specs,
        out_shape=jax.ShapeDtypeStruct((n_pad, fout_pad), out_dtype),
        scratch_shapes=scratch,
        compiler_params=pltpu.CompilerParams(
            dimension_semantics=("parallel", "parallel", "arbitrary")),
    )(x, agg, wr_t, wl_t, b_row)


# ---------------------------------------------------------------------------
# Parameter prep (done ONCE, outside the forward loop) + forward pass.
# ---------------------------------------------------------------------------
def prepare_params(layer_params, compute_dtype=jnp.bfloat16):
    """Pre-transpose, zero-pad and cast the nn.Linear weights once."""
    prepared = []
    for (w_l, w_r, b) in layer_params:
        f_out, f_in = w_l.shape
        fin_pad = _round_up(f_in, LANE)
        fout_pad = _round_up(f_out, LANE)
        wl_t = (jnp.zeros((fin_pad, fout_pad), jnp.float32)
                .at[:f_in, :f_out].set(w_l.T).astype(compute_dtype))
        wr_t = (jnp.zeros((fin_pad, fout_pad), jnp.float32)
                .at[:f_in, :f_out].set(w_r.T).astype(compute_dtype))
        b_row = jnp.zeros((1, fout_pad), jnp.float32).at[0, :f_out].set(b)
        prepared.append((wl_t, wr_t, b_row, f_out))
    return prepared


def graphsage_forward(x, nbr_flat, deg, prepared, *, num_class, act="relu",
                      compute_dtype=jnp.bfloat16, tm=128, tn=LANE, tk=256):
    """
    x         : (N, F0) f32 node features
    nbr_flat  : (N_pad * D_max,) i32 flattened padded neighbour table
    deg       : (N_pad,) i32 in-degree per node (0 for padding rows)
    prepared  : output of prepare_params()
    """
    n, f0 = x.shape
    n_pad = deg.shape[0]
    assert nbr_flat.shape[0] % n_pad == 0
    d_max = nbr_flat.shape[0] // n_pad
    num_layers = len(prepared)

    tm = min(tm, n_pad)
    assert n_pad % tm == 0 and n_pad >= n

    f0_pad = _round_up(f0, LANE)
    h = (jnp.zeros((n_pad, f0_pad), compute_dtype)
         .at[:n, :f0].set(x.astype(compute_dtype)))

    for li, (wl_t, wr_t, b_row, f_out) in enumerate(prepared):
        last = li == num_layers - 1
        agg = mean_aggregate(h, nbr_flat, deg, d_max=d_max, tm=tm)
        h = sage_layer(
            h, agg, wr_t, wl_t, b_row,
            apply_relu=(not last) and (act == "relu"),
            softmax_valid_cols=(f_out if last else None),
            out_dtype=jnp.float32 if last else compute_dtype,
            tm=tm, tn=tn, tk=tk)
        # dropout: identity in eval mode

    return h[:n, :num_class]


# ---------------------------------------------------------------------------
# Pure-JAX reference (same semantics as the PyTorch module, eval mode)
# ---------------------------------------------------------------------------
def _reference_forward(x, nbr, deg, layer_params):
    n = x.shape[0]
    d_max = nbr.shape[1]
    hp = lax.Precision.HIGHEST
    h = x
    for li, (w_l, w_r, b) in enumerate(layer_params):
        gathered = h[nbr[:n]]                                   # (n, D_max, F)
        mask = jnp.arange(d_max)[None, :] < deg[:n, None]
        s = jnp.sum(jnp.where(mask[:, :, None], gathered, 0.0), axis=1)
        degf = jnp.maximum(deg[:n], 1).astype(h.dtype)
        agg = s / degf[:, None]
        out = (jnp.dot(agg, w_l.T, precision=hp)
               + jnp.dot(h, w_r.T, precision=hp) + b[None, :])
        if li != len(layer_params) - 1:
            out = jnp.maximum(out, 0.0)
        h = out
    return jax.nn.log_softmax(h, axis=1)


if __name__ == "__main__":
    key = jax.random.PRNGKey(0)
    k_x, k_src, k_dst, k_w = jax.random.split(key, 4)

    # GraphSAGE config (matches the autogl module's args dict)
    num_nodes = 60
    features_num = 96
    hidden = [64]
    num_class = 7
    num_layers = 2                 # == len(hidden) + 1
    num_edges = 240

    ROW_TILE = 128                 # production node-row tile
    n_pad = _round_up(num_nodes, ROW_TILE)

    # node features
    x = jax.random.normal(k_x, (num_nodes, features_num), jnp.float32)

    # random directed edge_index (2, E): row0 = source j, row1 = target i
    src = jax.random.randint(k_src, (num_edges,), 0, num_nodes, jnp.int32)
    dst = jax.random.randint(k_dst, (num_edges,), 0, num_nodes, jnp.int32)

    # host-side preprocessing: padded neighbour table + in-degree
    src_np = np.asarray(src)
    dst_np = np.asarray(dst)
    deg_np = np.zeros((n_pad,), np.int32)
    for t in dst_np:
        deg_np[t] += 1
    d_max = max(1, int(deg_np.max()))
    nbr_np = np.zeros((n_pad, d_max), np.int32)
    fill = np.zeros((n_pad,), np.int32)
    for s_, t_ in zip(src_np, dst_np):
        nbr_np[t_, fill[t_]] = s_
        fill[t_] += 1
    nbr = jnp.asarray(nbr_np)
    nbr_flat = jnp.asarray(nbr_np.reshape(-1))
    deg = jnp.asarray(deg_np)

    # layer parameters (PyTorch nn.Linear layout: W (out, in), b (out,))
    dims = [features_num] + hidden + [num_class]
    layer_params = []
    for li in range(num_layers):
        f_in, f_out = dims[li], dims[li + 1]
        k_w, k1, k2, k3 = jax.random.split(k_w, 4)
        scale = 1.0 / float(np.sqrt(f_in))
        w_l = jax.random.uniform(k1, (f_out, f_in), jnp.float32, -scale, scale)
        w_r = jax.random.uniform(k2, (f_out, f_in), jnp.float32, -scale, scale)
        b = jax.random.uniform(k3, (f_out,), jnp.float32, -scale, scale)
        layer_params.append((w_l, w_r, b))

    ref = jax.block_until_ready(_reference_forward(x, nbr, deg, layer_params))

    # f32 path: tight correctness check
    params_f32 = prepare_params(layer_params, compute_dtype=jnp.float32)
    out_f32 = jax.block_until_ready(
        graphsage_forward(x, nbr_flat, deg, params_f32,
                          num_class=num_class, compute_dtype=jnp.float32))
    err_f32 = float(jnp.max(jnp.abs(out_f32 - ref)))
    if not np.isfinite(err_f32) or err_f32 > 1e-4:
        raise AssertionError(f"f32 Pallas GraphSAGE mismatch: max|err|={err_f32}")

    # bf16 streaming path (f32 accumulation): sanity check
    params_bf16 = prepare_params(layer_params, compute_dtype=jnp.bfloat16)
    out_bf16 = jax.block_until_ready(
        graphsage_forward(x, nbr_flat, deg, params_bf16,
                          num_class=num_class, compute_dtype=jnp.bfloat16))
    err_bf16 = float(jnp.max(jnp.abs(out_bf16 - ref)))
    if not np.isfinite(err_bf16) or err_bf16 > 1e-1:
        raise AssertionError(f"bf16 Pallas GraphSAGE mismatch: max|err|={err_bf16}")

    print("KERNEL_OK")
</pallas_src>

<mosaic_0001>
module attributes {stable_mosaic.version = 11 : i64} {
  func.func @_mean_agg_kernel(%arg0: i32, %arg1: memref<1280xi32, #tpu.memory_space<smem>>, %arg2: memref<128xi32, #tpu.memory_space<smem>>, %arg3: memref<128x1x128xf32, #tpu.memory_space<vmem>>, %arg4: memref<128x1x128xf32, #tpu.memory_space<vmem>>) attributes {dimension_semantics = [#tpu.dimension_semantics<parallel>], iteration_bounds = array<i64: 1>, scalar_prefetch = 2 : i64, scratch_operands = 0 : i64, tpu.core_type = #tpu.core_type<tc>, window_params = [{pipeline_mode = #tpu.pipeline_mode<synchronous>, transform_indices = @transform_0, window_bounds = array<i64: 128, 1, 128>}, {transform_indices = @transform_1, window_bounds = array<i64: 128, 1, 128>}]} {
    %c128_i32 = arith.constant 128 : i32
    %0 = arith.muli %arg0, %c128_i32 : i32
    %c0_i32 = arith.constant 0 : i32
    %c128_i32_0 = arith.constant 128 : i32
    %1 = arith.addi %c0_i32, %c128_i32_0 : i32
    %c1_i32 = arith.constant 1 : i32
    scf.for %arg5 = %c0_i32 to %1 step %c1_i32  : i32 {
      %2 = arith.addi %0, %arg5 : i32
      %3 = arith.index_cast %2 : i32 to index
      %4 = memref.load %arg2[%3] : memref<128xi32, #tpu.memory_space<smem>>
      %cst = arith.constant 0.000000e+00 : f32
      %5 = vector.broadcast %cst : f32 to vector<1x128xf32>
      %c0_i32_2 = arith.constant 0 : i32
      %6 = arith.subi %4, %c0_i32_2 : i32
      %7 = arith.addi %c0_i32_2, %6 : i32
      %c1_i32_3 = arith.constant 1 : i32
      %8 = scf.for %arg6 = %c0_i32_2 to %7 step %c1_i32_3 iter_args(%arg7 = %5) -> (vector<1x128xf32>)  : i32 {
        %c10_i32 = arith.constant 10 : i32
        %17 = arith.muli %2, %c10_i32 : i32
        %18 = arith.addi %17, %arg6 : i32
        %19 = arith.index_cast %18 : i32 to index
        %20 = memref.load %arg1[%19] : memref<1280xi32, #tpu.memory_space<smem>>
        %21 = arith.index_cast %20 : i32 to index
        %c0_6 = arith.constant 0 : index
        %c0_7 = arith.constant 0 : index
        %22 = vector.load %arg3[%21, %c0_6, %c0_7] : memref<128x1x128xf32, #tpu.memory_space<vmem>>, vector<1x1x128xf32>
        %23 = vector.shape_cast %22 : vector<1x1x128xf32> to vector<1x128xf32>
        %24 = arith.addf %arg7, %23 : vector<1x128xf32>
        scf.yield %24 : vector<1x128xf32>
      }
      %9 = arith.sitofp %4 : i32 to f32
      %cst_4 = arith.constant 1.000000e+00 : f32
      %10 = arith.maximumf %9, %cst_4 : f32
      %11 = vector.broadcast %10 : f32 to vector<1x128xf32>
      %12 = arith.divf %8, %11 : vector<1x128xf32>
      %13 = arith.index_cast %arg5 : i32 to index
      %c0 = arith.constant 0 : index
      %c0_5 = arith.constant 0 : index
      %14 = vector.load %arg4[%13, %c0, %c0_5] : memref<128x1x128xf32, #tpu.memory_space<vmem>>, vector<1x1x128xf32>
      %15 = vector.shape_cast %14 : vector<1x1x128xf32> to vector<1x128xf32>
      %16 = vector.shape_cast %12 : vector<1x128xf32> to vector<1x1x128xf32>
      tpu.vector_store %arg4[%13, %c0, %c0_5], %16 {strides = array<i32>} : memref<128x1x128xf32, #tpu.memory_space<vmem>>, vector<1x1x128xf32>,
    }
    %c128_i32_1 = arith.constant 128 : i32
    return
  }
  func.func @transform_0(%arg0: i32, %arg1: memref<1280xi32, #tpu.memory_space<smem>>, %arg2: memref<128xi32, #tpu.memory_space<smem>>) -> (i32, i32, i32) {
    %c0_i32 = arith.constant 0 : i32
    %c0_i32_0 = arith.constant 0 : i32
    %c0_i32_1 = arith.constant 0 : i32
    %c0_i32_2 = arith.constant 0 : i32
    return %c0_i32, %c0_i32_0, %c0_i32_1 : i32, i32, i32
  }
  func.func @transform_1(%arg0: i32, %arg1: memref<1280xi32, #tpu.memory_space<smem>>, %arg2: memref<128xi32, #tpu.memory_space<smem>>) -> (i32, i32, i32) {
    %c0_i32 = arith.constant 0 : i32
    %c0_i32_0 = arith.constant 0 : i32
    %c0_i32_1 = arith.constant 0 : i32
    return %arg0, %c0_i32, %c0_i32_0 : i32, i32, i32
  }
}

</mosaic_0001>

<llo_original>
// kernel: tpu_custom_call.1
$region0: #{tpu_custom_call.1}
  #allocation0 [shape = 'u32[]', space=smem, size = 0x4, offset = 0x4, fixed_abs, tag = 'smem constant byte address 0x4 - core index']
  #allocation1 [shape = 'u32[144,128]{1,0:T(1,128)}', space=vmem, size = 0x12000, scoped, tag = 'internal scratch']
  #allocation2 [shape = 's32[1]{0}', space=sflag, size = 0x4, scoped, tag = 'scoped memory for tpu_custom_call.1']
  #allocation3 [shape = 'u8[5120]{0}', space=smem, size = 0x1400, scoped, tag = 'prefetched SMEM operand 0']
  #allocation4 [shape = 'u8[512]{0}', space=smem, size = 0x200, scoped, tag = 'prefetched SMEM operand 1']
  %s0 = inlined_call_operand.hbm [shape: s32[1280], index: 0, kind: input, shape index: {}]
  %s1 = inlined_call_operand.vmem [shape: s32[128], index: 1, kind: input, shape index: {}]
  %s2 = inlined_call_operand.hbm [shape: f32[128,1,128], index: 2, kind: input, shape index: {}]
  %s3 = inlined_call_operand.hbm [shape: f32[128,1,128], index: 3, kind: output, shape index: {}]
  %s4 = sld [smem:[#allocation0]]
  $region32: #{tpu_custom_call.1} parent=0
    _
  %s6 = ssub.s32 1, %s4
  %s7 = scalar_select 0, %s6, %s4
  %9 = dma.hbm_to_smem %s0, 160, [#allocation3], [#allocation2]
  %s10 = sshll.u32 %s1, 4
  %s11 = int_to_ptr.vmem [resolvable:$true] %s10
  %13 = dma.vmem_to_smem %s11, 16, [#allocation4], [#allocation2]
  %14 = dma.done [#allocation2], 176
  %15 = sfence
  $region1: #{tpu_custom_call.1} parent=0
    #allocation5 [shape = 'u8[65536]{0}', space=vmem, size = 0x10000, scoped, tag = 'input window, operand 2, single buffered']
    #allocation6 [shape = 's32[1]{0}', space=sflag, size = 0x4, scoped, tag = 'scoped memory for tpu_custom_call.1']
    #allocation7 [shape = 's32[1]{0}', space=sflag, size = 0x4, scoped, tag = 'scoped memory for tpu_custom_call.1']
    #allocation8 [shape = 'u8[65536]{0}', space=vmem, size = 0x10000, scoped, tag = 'output window, operand 0, single buffered']
    %16 = vsyncpa [#allocation6], 0
    %17 = vsyncpa [#allocation7], 0
    // Predicated region
    $region2: #{tpu_custom_call.1} parent=1 // pred_check
      _
    $region3: #{tpu_custom_call.1} parent=1 // pred_check_branch
      %19 = sbr.rel (0) target = $region5
    $region4: #{tpu_custom_call.1} parent=1 // pred_region
      %s21 = ssub.s32 2048, 2048
      %22 = vsyncadd [#allocation6], %s21
      %s23 = sshll.u32 [#allocation5], 4
      %s24 = int_to_ptr.vmem [resolvable:$true] %s23
      %29 = dma.hbm_to_vmem [thread:$0]  %s2, 2048, %s24, [#allocation6], 16, 16, 1
    $region5: #{tpu_custom_call.1} parent=1 // pred_fallthru
      _
    // Predicated region
    $region6: #{tpu_custom_call.1} parent=1 // pred_check
      _
    $region7: #{tpu_custom_call.1} parent=1 // pred_check_branch
      %31 = sbr.rel (0) target = $region9
    $region8: #{tpu_custom_call.1} parent=1 // pred_region
      %32 = dma.done [#allocation6], 2048
    $region9: #{tpu_custom_call.1} parent=1 // pred_fallthru
      _
    %s33 = smul.u32 0, 128
    loop: start=0, step=1, limit=128
    $region10: #{tpu_custom_call.1} parent=1 // loop_pre_header
      _
    $region11: #{tpu_custom_call.1} parent=1 // loop_header
      %s35 = sphi 0, %s39
      %p36 = scmp.ge.s32.totalorder %s35, 128
    $region12: #{tpu_custom_call.1} parent=1 // loop_header_branch
      %38 = sbr.rel (%p36) target = $region16
    $region13: #{tpu_custom_call.1} parent=1 // loop_body
      %s40 = sadd.s32 %s33, %s35
      %s41 = sld [smem:[#allocation4 + %s40]]
      // While loop
      $region17: #{tpu_custom_call.1} parent=13 // loop_pre_header
        _
      $region18: #{tpu_custom_call.1} parent=13 // loop_header
        %s43 = sphi 0, %s45
        %p44 = scmp.ge.s32.totalorder %s43, %s41
        %v48 = vphi 0.0, %v54
      $region19: #{tpu_custom_call.1} parent=13 // loop_header_branch
        %47 = sbr.rel (%p44) target = $region23
      $region20: #{tpu_custom_call.1} parent=13 // loop_body
        %s49 = smul.u32 %s40, 10
        %s50 = sadd.s32 %s49, %s43
        %s51 = sld [smem:[#allocation3 + %s50]]
        %s52 = scalar_lea.vmem [#allocation5], %s51
        %v53 = vld [vmem:[%s52] sm:$0x1]
        %v54 = vadd.f32 %v48, %v53
      $region21: #{tpu_custom_call.1} parent=13 // loop_footer
        %s45 = sadd.s32 %s43, 1
      $region22: #{tpu_custom_call.1} parent=13 // loop_footer_branch
        %42 = sbr.rel target = $region18
      $region23: #{tpu_custom_call.1} parent=13 // loop_exit
        _
      %s55 = scvt.s32.f32 %s41
      %s56 = smax.f32 %s55, 1.0
      %v57 = vstv %s56
      %v58 = vrcp.pop %v57
      %v59 = vmul.f32 %v48, %v58
      %s60 = scalar_lea.vmem [#allocation8], %s35
      %61 = vst [vmem:[%s60] sm:$0x1] %v59
    $region14: #{tpu_custom_call.1} parent=1 // loop_footer
      %s39 = sadd.s32 1, %s35
    $region15: #{tpu_custom_call.1} parent=1 // loop_footer_branch
      %34 = sbr.rel target = $region11
    $region16: #{tpu_custom_call.1} parent=1 // loop_exit
      _
    // Predicated region
    $region24: #{tpu_custom_call.1} parent=1 // pred_check
      _
    $region25: #{tpu_custom_call.1} parent=1 // pred_check_branch
      %63 = sbr.rel (0) target = $region27
    $region26: #{tpu_custom_call.1} parent=1 // pred_region
      %s65 = ssub.s32 2048, 2048
      %66 = vsyncadd [#allocation7], %s65
      %s67 = sshll.u32 [#allocation8], 4
      %s68 = int_to_ptr.vmem [resolvable:$true] %s67
      %73 = dma.vmem_to_hbm [thread:$0]  %s68, 2048, %s3, [#allocation7], 16, 16, 1
    $region27: #{tpu_custom_call.1} parent=1 // pred_fallthru
      _
    // Predicated region
    $region28: #{tpu_custom_call.1} parent=1 // pred_check
      _
    $region29: #{tpu_custom_call.1} parent=1 // pred_check_branch
      %75 = sbr.rel (0) target = $region31
    $region30: #{tpu_custom_call.1} parent=1 // pred_region
      %76 = dma.done [#allocation7], 2048
    $region31: #{tpu_custom_call.1} parent=1 // pred_fallthru
      _
    %77 = vsyncpa [#allocation6], 1
    %78 = vsyncpa [#allocation7], 1

</llo_original>
